<compile_context>
chip_gen: v6e
topology: v6e:2x2x1
jax: 0.10.0
libtpu: 0.0.40
codegen_flags: <defaults>
</compile_context>

<pallas_src>
import functools

import jax
import jax.numpy as jnp
from jax.experimental import pallas as pl
from jax.experimental.pallas import tpu as pltpu


def _round_up(v, m):
    return ((v + m - 1) // m) * m


def _cdiv(a, b):
    return (a + b - 1) // b


def _mish(h):
    """Mish(h) = h * tanh(softplus(h)) = h * n / (n + 2),  n = e*(e+2), e = exp(h).

    Single exp per element; n = e*(e+2) avoids the cancellation of (1+e)^2 - 1 for
    small e.  The divide is an approximate EUP reciprocal plus one Newton-Raphson
    refinement on the VPU (keeps ~f32 accuracy off the EUP critical path)."""
    e = jnp.exp(jnp.minimum(h, 20.0))      # clamp keeps n finite; mish -> h there
    n = e * (e + 2.0)                      # == tanh(softplus(h)) numerator
    d = n + 2.0                            # denominator
    r = pl.reciprocal(d, approx=True)
    r = r * (2.0 - d * r)                  # one NR step -> ~2^-24 relative error
    return h * n * r


def _koopman_fwd_kernel(nx, xT_ref, w1T_ref, b1_ref, w2T_ref, b2_ref, outT_ref):
    # Feature-major: batch on the lane axis.
    xT = xT_ref[...]                                                    # (nx, TB)
    h = jnp.dot(w1T_ref[...], xT, preferred_element_type=jnp.float32) + b1_ref[...]
    h = _mish(h)                                                        # (hidden, TB)
    z = jnp.dot(w2T_ref[...], h, preferred_element_type=jnp.float32) + b2_ref[...]
    # cat([x, z_enc], dim=-1) -> two sublane-range stores, no lane shuffle.
    outT_ref[:nx, :] = xT.astype(outT_ref.dtype)
    outT_ref[nx:, :] = z.astype(outT_ref.dtype)


def _pick_tile_b(batch, tile_b):
    """Lane-aligned batch tile: large enough to amortize the ~0.35us per-step
    pipeline overhead, small enough to fit the f32 hidden intermediate in the
    32 MiB scoped-VMEM budget, and leaving >= 2 grid steps when possible so
    ("parallel",) can split the batch across both v7x TensorCores."""
    lane_b = _round_up(batch, 128)
    tile_b = max(128, min(_round_up(tile_b, 128), lane_b))
    if lane_b >= 256 and _cdiv(batch, tile_b) < 2:
        tile_b = _round_up(_cdiv(lane_b, 2), 128)
    return tile_b


def koopman_encode_fm(xT, w1T, b1, w2T, b2, *, nx, nz, tile_b=8192, out_dtype=None):
    """Feature-major forward (performance path).

    xT : (nx, B)         states, batch on the minor (lane) axis
    w1T: (hidden, nx)    encoder layer-1 weight (out, in)
    b1 : (hidden, 1)
    w2T: (nz-nx, hidden) encoder layer-2 weight (out, in)
    b2 : (nz-nx, 1)
    Returns (nz, B) = cat([x, MLP(x)], feature axis), feature-major.
    """
    n_in, batch = xT.shape
    hidden = w1T.shape[0]
    n_enc = nz - nx
    assert n_in == nx and w1T.shape == (hidden, nx) and w2T.shape == (n_enc, hidden)
    out_dtype = xT.dtype if out_dtype is None else out_dtype

    tile_b = _pick_tile_b(batch, tile_b)
    grid = (_cdiv(batch, tile_b),)

    in_isz = jnp.dtype(xT.dtype).itemsize
    out_isz = jnp.dtype(out_dtype).itemsize
    cost = pl.CostEstimate(
        flops=2 * batch * (nx * hidden + hidden * n_enc),
        transcendentals=2 * batch * hidden,           # exp + approx reciprocal
        bytes_accessed=(batch * (nx * in_isz + nz * out_isz)
                        + 4 * (hidden * (nx + 1) + n_enc * (hidden + 1))),
    )

    kernel = functools.partial(_koopman_fwd_kernel, nx)

    return pl.pallas_call(
        kernel,
        out_shape=jax.ShapeDtypeStruct((nz, batch), out_dtype),
        grid=grid,
        in_specs=[
            pl.BlockSpec((nx, tile_b), lambda i: (0, i)),      # x streams per tile
            pl.BlockSpec((hidden, nx), lambda i: (0, 0)),      # weights stay resident
            pl.BlockSpec((hidden, 1), lambda i: (0, 0)),
            pl.BlockSpec((n_enc, hidden), lambda i: (0, 0)),
            pl.BlockSpec((n_enc, 1), lambda i: (0, 0)),
        ],
        out_specs=pl.BlockSpec((nz, tile_b), lambda i: (0, i)),
        compiler_params=pltpu.CompilerParams(
            dimension_semantics=("parallel",),           # megacore split on v7x
            vmem_limit_bytes=32 * 1024 * 1024,           # v5e scoped default is 16 MiB
        ),
        cost_estimate=cost,
    )(xT, w1T, b1, w2T, b2)


class KoopmanAutoencoderPallas:
    """Mirrors KoopmanAutoencoder's parameter shapes; forward() (encoder MLP +
    concat) runs through the Pallas kernel."""

    def __init__(self, nx, nu, nz, dt, hidden_dims=(64,), key=None):
        assert nz > nx, "Latent dimension must be greater than state dimension"
        assert len(hidden_dims) == 1, "kernel is specialized to one hidden layer"
        self.nx, self.nu, self.nz, self.dt = nx, nu, nz, dt
        key = jax.random.PRNGKey(0) if key is None else key
        dims = [nx] + list(hidden_dims) + [nz - nx]

        # Encoder weights stored (in, out); bias stored (out,), like nn.Linear.
        self.weights, self.biases = [], []
        for i in range(len(dims) - 1):
            key, kw, kb = jax.random.split(key, 3)
            bound = 1.0 / float(jnp.sqrt(dims[i]))
            self.weights.append(jax.random.uniform(
                kw, (dims[i], dims[i + 1]), jnp.float32, -bound, bound))
            self.biases.append(jax.random.uniform(
                kb, (dims[i + 1],), jnp.float32, -bound, bound))

        # Kernel-layout copies built once (no per-call transposes/reshapes).
        hidden, n_enc = dims[1], dims[2]
        self._w1T = self.weights[0].T                    # (hidden, nx)
        self._b1 = self.biases[0].reshape(hidden, 1)
        self._w2T = self.weights[1].T                    # (n_enc, hidden)
        self._b2 = self.biases[1].reshape(n_enc, 1)

        # Remaining module parameters (unused by forward(), kept for parity).
        self.Q = jnp.eye(nz, dtype=jnp.float32)
        self.C = -jnp.ones((nz,), jnp.float32)
        self.B = jnp.zeros((nz, nu), jnp.float32)
        self.Cs = jnp.zeros((nz, nu * nz), jnp.float32)
        self.d = jnp.zeros((nz, 1), jnp.float32)
        self.P = jnp.zeros((nx, nz), jnp.float32).at[:, :nx].set(jnp.eye(nx))
        # TODO(synk): get_dynamics()/loss() use torch.matrix_exp + autograd Jacobian
        # norms; they are not part of forward() and are not implemented here.

    def forward_feature_major(self, xT, tile_b=8192, out_dtype=None):
        """Performance path: xT is (nx, B); returns (nz, B)."""
        return koopman_encode_fm(xT, self._w1T, self._b1, self._w2T, self._b2,
                                 nx=self.nx, nz=self.nz, tile_b=tile_b,
                                 out_dtype=out_dtype)

    def forward(self, x, tile_b=8192, out_dtype=None):
        """Batch-major convenience wrapper (PyTorch-parity API): x (B, nx) -> (B, nz).
        Pays two small XLA transposes around the kernel; prefer
        forward_feature_major for throughput."""
        return self.forward_feature_major(x.T, tile_b=tile_b, out_dtype=out_dtype).T


def _reference_forward(model, x):
    h = x @ model.weights[0] + model.biases[0]
    h = h * jnp.tanh(jax.nn.softplus(h))          # Mish
    z = h @ model.weights[1] + model.biases[1]
    return jnp.concatenate([x, z], axis=-1)


if __name__ == "__main__":
    nx, nu, nz, dt = 4, 2, 12, 0.05
    model = KoopmanAutoencoderPallas(nx, nu, nz, dt, hidden_dims=(64,))

    # Small batch through the batch-major (PyTorch-parity) wrapper.
    x = jax.random.normal(jax.random.PRNGKey(0), (8, nx), jnp.float32)
    out = jax.block_until_ready(model.forward(x))
    ref = _reference_forward(model, x)
    assert out.shape == (8, nz)
    assert jnp.allclose(out, ref, atol=1e-5, rtol=1e-5), \
        float(jnp.max(jnp.abs(out - ref)))

    # Feature-major fast path with a ragged batch (not a multiple of the 128-lane
    # tile): exercises the cdiv grid + boundary masking (no wrapper pad/slice).
    x2 = jax.random.normal(jax.random.PRNGKey(1), (300, nx), jnp.float32)
    out2T = jax.block_until_ready(model.forward_feature_major(x2.T, tile_b=256))
    ref2 = _reference_forward(model, x2)
    assert out2T.shape == (nz, 300)
    assert jnp.allclose(out2T.T, ref2, atol=1e-5, rtol=1e-5), \
        float(jnp.max(jnp.abs(out2T.T - ref2)))

    print("KERNEL_OK")
</pallas_src>

<mosaic_0001>
module attributes {stable_mosaic.version = 11 : i64} {
  func.func @_koopman_fwd_kernel(%arg0: i32, %arg1: memref<4x128xf32, #tpu.memory_space<vmem>>, %arg2: memref<64x4xf32, #tpu.memory_space<vmem>>, %arg3: memref<64x1xf32, #tpu.memory_space<vmem>>, %arg4: memref<8x64xf32, #tpu.memory_space<vmem>>, %arg5: memref<8x1xf32, #tpu.memory_space<vmem>>, %arg6: memref<12x128xf32, #tpu.memory_space<vmem>>) attributes {dimension_semantics = [#tpu.dimension_semantics<parallel>], iteration_bounds = array<i64: 1>, scalar_prefetch = 0 : i64, scratch_operands = 0 : i64, tpu.core_type = #tpu.core_type<tc>, window_params = [{transform_indices = @transform_0, window_bounds = array<i64: 4, 128>}, {pipeline_mode = #tpu.pipeline_mode<synchronous>, transform_indices = @transform_1, window_bounds = array<i64: 64, 4>}, {pipeline_mode = #tpu.pipeline_mode<synchronous>, transform_indices = @transform_2, window_bounds = array<i64: 64, 1>}, {pipeline_mode = #tpu.pipeline_mode<synchronous>, transform_indices = @transform_3, window_bounds = array<i64: 8, 64>}, {pipeline_mode = #tpu.pipeline_mode<synchronous>, transform_indices = @transform_4, window_bounds = array<i64: 8, 1>}, {transform_indices = @transform_5, window_bounds = array<i64: 12, 128>}]} {
    %c0 = arith.constant 0 : index
    %c0_0 = arith.constant 0 : index
    %0 = vector.load %arg1[%c0, %c0_0] : memref<4x128xf32, #tpu.memory_space<vmem>>, vector<4x128xf32>
    %c0_1 = arith.constant 0 : index
    %c0_2 = arith.constant 0 : index
    %1 = vector.load %arg2[%c0_1, %c0_2] : memref<64x4xf32, #tpu.memory_space<vmem>>, vector<64x4xf32>
    %cst = arith.constant dense<0.000000e+00> : vector<64x128xf32>
    %2 = tpu.matmul %1, %0, %cst {dimension_numbers = #tpu.dot_dimension_numbers<[1], [0], [0], [1], [0, 0, 1, 1], [], []>} : vector<64x4xf32>, vector<4x128xf32>, vector<64x128xf32> -> vector<64x128xf32>
    %c0_3 = arith.constant 0 : index
    %c0_4 = arith.constant 0 : index
    %3 = vector.load %arg3[%c0_3, %c0_4] : memref<64x1xf32, #tpu.memory_space<vmem>>, vector<64x1xf32>
    %4 = vector.broadcast %3 : vector<64x1xf32> to vector<64x128xf32>
    %5 = arith.addf %2, %4 : vector<64x128xf32>
    %cst_5 = arith.constant 2.000000e+01 : f32
    %6 = vector.broadcast %cst_5 : f32 to vector<64x128xf32>
    %7 = arith.minimumf %5, %6 : vector<64x128xf32>
    %8 = math.exp %7 : vector<64x128xf32>
    %cst_6 = arith.constant 2.000000e+00 : f32
    %9 = vector.broadcast %cst_6 : f32 to vector<64x128xf32>
    %10 = arith.addf %8, %9 : vector<64x128xf32>
    %11 = arith.mulf %8, %10 : vector<64x128xf32>
    %cst_7 = arith.constant 2.000000e+00 : f32
    %12 = vector.broadcast %cst_7 : f32 to vector<64x128xf32>
    %13 = arith.addf %11, %12 : vector<64x128xf32>
    %14 = tpu.reciprocal %13 {approx = true} : vector<64x128xf32> -> vector<64x128xf32>
    %15 = arith.mulf %13, %14 : vector<64x128xf32>
    %cst_8 = arith.constant 2.000000e+00 : f32
    %16 = vector.broadcast %cst_8 : f32 to vector<64x128xf32>
    %17 = arith.subf %16, %15 : vector<64x128xf32>
    %18 = arith.mulf %14, %17 : vector<64x128xf32>
    %19 = arith.mulf %5, %11 : vector<64x128xf32>
    %20 = arith.mulf %19, %18 : vector<64x128xf32>
    %c0_9 = arith.constant 0 : index
    %c0_10 = arith.constant 0 : index
    %21 = vector.load %arg4[%c0_9, %c0_10] : memref<8x64xf32, #tpu.memory_space<vmem>>, vector<8x64xf32>
    %cst_11 = arith.constant dense<0.000000e+00> : vector<8x128xf32>
    %22 = tpu.matmul %21, %20, %cst_11 {dimension_numbers = #tpu.dot_dimension_numbers<[1], [0], [0], [1], [0, 0, 1, 1], [], []>} : vector<8x64xf32>, vector<64x128xf32>, vector<8x128xf32> -> vector<8x128xf32>
    %c0_12 = arith.constant 0 : index
    %c0_13 = arith.constant 0 : index
    %23 = vector.load %arg5[%c0_12, %c0_13] : memref<8x1xf32, #tpu.memory_space<vmem>>, vector<8x1xf32>
    %24 = vector.broadcast %23 : vector<8x1xf32> to vector<8x128xf32>
    %25 = arith.addf %22, %24 : vector<8x128xf32>
    %c0_14 = arith.constant 0 : index
    %c0_15 = arith.constant 0 : index
    %26 = vector.load %arg6[%c0_14, %c0_15] : memref<12x128xf32, #tpu.memory_space<vmem>>, vector<4x128xf32>
    tpu.vector_store %arg6[%c0_14, %c0_15], %0 {strides = array<i32>} : memref<12x128xf32, #tpu.memory_space<vmem>>, vector<4x128xf32>,
    %c4 = arith.constant 4 : index
    %c0_16 = arith.constant 0 : index
    %27 = vector.load %arg6[%c4, %c0_16] : memref<12x128xf32, #tpu.memory_space<vmem>>, vector<8x128xf32>
    tpu.vector_store %arg6[%c4, %c0_16], %25 {strides = array<i32>} : memref<12x128xf32, #tpu.memory_space<vmem>>, vector<8x128xf32>,
    return
  }
  func.func @transform_0(%arg0: i32) -> (i32, i32) {
    %c0_i32 = arith.constant 0 : i32
    %c0_i32_0 = arith.constant 0 : i32
    return %c0_i32, %arg0 : i32, i32
  }
  func.func @transform_1(%arg0: i32) -> (i32, i32) {
    %c0_i32 = arith.constant 0 : i32
    %c0_i32_0 = arith.constant 0 : i32
    %c0_i32_1 = arith.constant 0 : i32
    return %c0_i32, %c0_i32_0 : i32, i32
  }
  func.func @transform_2(%arg0: i32) -> (i32, i32) {
    %c0_i32 = arith.constant 0 : i32
    %c0_i32_0 = arith.constant 0 : i32
    %c0_i32_1 = arith.constant 0 : i32
    return %c0_i32, %c0_i32_0 : i32, i32
  }
  func.func @transform_3(%arg0: i32) -> (i32, i32) {
    %c0_i32 = arith.constant 0 : i32
    %c0_i32_0 = arith.constant 0 : i32
    %c0_i32_1 = arith.constant 0 : i32
    return %c0_i32, %c0_i32_0 : i32, i32
  }
  func.func @transform_4(%arg0: i32) -> (i32, i32) {
    %c0_i32 = arith.constant 0 : i32
    %c0_i32_0 = arith.constant 0 : i32
    %c0_i32_1 = arith.constant 0 : i32
    return %c0_i32, %c0_i32_0 : i32, i32
  }
  func.func @transform_5(%arg0: i32) -> (i32, i32) {
    %c0_i32 = arith.constant 0 : i32
    %c0_i32_0 = arith.constant 0 : i32
    return %c0_i32, %arg0 : i32, i32
  }
}

</mosaic_0001>

<llo_original>
// kernel: tpu_custom_call.1
$region0: #{tpu_custom_call.1}
  #allocation0 [shape = 'u32[]', space=smem, size = 0x4, offset = 0x4, fixed_abs, tag = 'smem constant byte address 0x4 - core index']
  #allocation1 [shape = 'u32[144,128]{1,0:T(1,128)}', space=vmem, size = 0x12000, scoped, tag = 'internal scratch']
  %s0 = inlined_call_operand.vmem [shape: f32[4,8], index: 0, kind: input, shape index: {}]
  %s1 = inlined_call_operand.vmem [shape: f32[64,4], index: 1, kind: input, shape index: {}]
  %s2 = inlined_call_operand.vmem [shape: f32[64,1], index: 2, kind: input, shape index: {}]
  %s3 = inlined_call_operand.vmem [shape: f32[8,64], index: 3, kind: input, shape index: {}]
  %s4 = inlined_call_operand.vmem [shape: f32[8,1], index: 4, kind: input, shape index: {}]
  %s5 = inlined_call_operand.vmem [shape: f32[12,8], index: 5, kind: output, shape index: {}]
  %s6 = sld [smem:[#allocation0]]
  $region30: #{tpu_custom_call.1} parent=0
    _
  %s8 = ssub.s32 1, %s6
  %s9 = scalar_select 0, %s8, %s6
  // Predicated region
  $region2: #{tpu_custom_call.1} parent=0 // pred_check
    _
  $region3: #{tpu_custom_call.1} parent=0 // pred_check_branch
    %11 = sbr.rel (0) target = $region5
  $region4: #{tpu_custom_call.1} parent=0 // pred_region
    _
  $region5: #{tpu_custom_call.1} parent=0 // pred_fallthru
    _
  // Predicated region
  $region6: #{tpu_custom_call.1} parent=0 // pred_check
    _
  $region7: #{tpu_custom_call.1} parent=0 // pred_check_branch
    %13 = sbr.rel (0) target = $region9
  $region8: #{tpu_custom_call.1} parent=0 // pred_region
    _
  $region9: #{tpu_custom_call.1} parent=0 // pred_fallthru
    _
  // Predicated region
  $region10: #{tpu_custom_call.1} parent=0 // pred_check
    _
  $region11: #{tpu_custom_call.1} parent=0 // pred_check_branch
    %15 = sbr.rel (0) target = $region13
  $region12: #{tpu_custom_call.1} parent=0 // pred_region
    _
  $region13: #{tpu_custom_call.1} parent=0 // pred_fallthru
    _
  // Predicated region
  $region14: #{tpu_custom_call.1} parent=0 // pred_check
    _
  $region15: #{tpu_custom_call.1} parent=0 // pred_check_branch
    %17 = sbr.rel (0) target = $region17
  $region16: #{tpu_custom_call.1} parent=0 // pred_region
    _
  $region17: #{tpu_custom_call.1} parent=0 // pred_fallthru
    _
  // Predicated region
  $region18: #{tpu_custom_call.1} parent=0 // pred_check
    _
  $region19: #{tpu_custom_call.1} parent=0 // pred_check_branch
    %19 = sbr.rel (0) target = $region21
  $region20: #{tpu_custom_call.1} parent=0 // pred_region
    _
  $region21: #{tpu_custom_call.1} parent=0 // pred_fallthru
    _
  %v20 = vld [vmem:[%s0] sm:$0xf]
  %v21 = vld [vmem:[%s1] sm:$0xff]
  %v22 = vld [vmem:[%s1 + $0x8] sm:$0xff]
  %v23 = vld [vmem:[%s1 + $0x10] sm:$0xff]
  %v24 = vld [vmem:[%s1 + $0x18] sm:$0xff]
  %v25 = vld [vmem:[%s1 + $0x20] sm:$0xff]
  %v26 = vld [vmem:[%s1 + $0x28] sm:$0xff]
  %v27 = vld [vmem:[%s1 + $0x30] sm:$0xff]
  %v28 = vld [vmem:[%s1 + $0x38] sm:$0xff]
  %v29 = vld [vmem:[%s2] sm:$0xff]
  %v30 = vld [vmem:[%s2 + $0x8] sm:$0xff]
  %v31 = vld [vmem:[%s2 + $0x10] sm:$0xff]
  %v32 = vld [vmem:[%s2 + $0x18] sm:$0xff]
  %v33 = vld [vmem:[%s2 + $0x20] sm:$0xff]
  %v34 = vld [vmem:[%s2 + $0x28] sm:$0xff]
  %v35 = vld [vmem:[%s2 + $0x30] sm:$0xff]
  %v36 = vld [vmem:[%s2 + $0x38] sm:$0xff]
  %38 = vset.pattern.permute.xlu0 0
  %39 = vperm.xlu0 %38, %v29
  %v40 = vpop.permute.xlu0 %39
  %43 = vset.pattern.permute.xlu0 0
  %44 = vperm.xlu0 %43, %v30
  %v45 = vpop.permute.xlu0 %44
  %48 = vset.pattern.permute.xlu0 0
  %49 = vperm.xlu0 %48, %v31
  %v50 = vpop.permute.xlu0 %49
  %53 = vset.pattern.permute.xlu0 0
  %54 = vperm.xlu0 %53, %v32
  %v55 = vpop.permute.xlu0 %54
  %58 = vset.pattern.permute.xlu0 0
  %59 = vperm.xlu0 %58, %v33
  %v60 = vpop.permute.xlu0 %59
  %63 = vset.pattern.permute.xlu0 0
  %64 = vperm.xlu0 %63, %v34
  %v65 = vpop.permute.xlu0 %64
  %68 = vset.pattern.permute.xlu0 0
  %69 = vperm.xlu0 %68, %v35
  %v70 = vpop.permute.xlu0 %69
  %73 = vset.pattern.permute.xlu0 0
  %74 = vperm.xlu0 %73, %v36
  %v75 = vpop.permute.xlu0 %74
  %vm77 = vcmask 31744
  %v79 = vsel %vm77, %v21, 0
  %v82 = vsel %vm77, %v22, 0
  %v85 = vsel %vm77, %v23, 0
  %v88 = vsel %vm77, %v24, 0
  %v91 = vsel %vm77, %v25, 0
  %v94 = vsel %vm77, %v26, 0
  %v97 = vsel %vm77, %v27, 0
  %v100 = vsel %vm77, %v28, 0
  %vm102 = vcmask 1043456
  %v104 = vsel %vm102, %v20, 0
  %106 = vmatprep.subr.mxu0 0.0
  %107 = vmatpush1.msra.mxu0 0.0
  %108 = vmatprep.subr.mxu0 0.0
  %109 = vmatpush1.msra.mxu0 0.0
  %110 = vmatprep.subr.mxu0 0.0
  %111 = vmatpush1.msra.mxu0 0.0
  %112 = vmatprep.subr.mxu0 0.0
  %113 = vmatpush1.msra.mxu0 0.0
  %114 = vmatprep.subr.mxu0 0.0
  %115 = vmatpush1.msra.mxu0 0.0
  %116 = vmatprep.subr.mxu0 0.0
  %117 = vmatpush1.msra.mxu0 0.0
  %118 = vmatprep.subr.mxu0 0.0
  %119 = vmatpush1.msra.mxu0 0.0
  %120 = vmatprep.subr.mxu0 0.0
  %121 = vmatpush1.msra.mxu0 0.0
  %122 = vmatprep.subr.mxu0 0.0
  %123 = vmatpush1.msra.mxu0 0.0
  %124 = vmatprep.subr.mxu0 0.0
  %125 = vmatpush1.msra.mxu0 0.0
  %126 = vmatprep.subr.mxu0 0.0
  %127 = vmatpush1.msra.mxu0 0.0
  %128 = vmatprep.subr.mxu0 0.0
  %129 = vmatpush1.msra.mxu0 0.0
  %130 = vmatprep.subr.mxu0 0.0
  %131 = vmatpush1.msra.mxu0 0.0
  %132 = vmatprep.subr.mxu0 0.0
  %133 = vmatpush1.msra.mxu0 0.0
  %134 = vmatprep.subr.mxu0 0.0
  %135 = vmatpush1.msra.mxu0 0.0
  %136 = vmatprep.subr.mxu0 0.0
  %137 = vmatpush1.msra.mxu0 %v104
  %138 = vmatprep.subr.mxu0 0.0
  %139 = vmatpush2.msra.mxu0 0.0
  %140 = vmatprep.subr.mxu0 0.0
  %141 = vmatpush2.msra.mxu0 0.0
  %142 = vmatprep.subr.mxu0 0.0
  %143 = vmatpush2.msra.mxu0 0.0
  %144 = vmatprep.subr.mxu0 0.0
  %145 = vmatpush2.msra.mxu0 0.0
  %146 = vmatprep.subr.mxu0 0.0
  %147 = vmatpush2.msra.mxu0 0.0
  %148 = vmatprep.subr.mxu0 0.0
  %149 = vmatpush2.msra.mxu0 0.0
  %150 = vmatprep.subr.mxu0 0.0
  %151 = vmatpush2.msra.mxu0 0.0
  %152 = vmatprep.subr.mxu0 0.0
  %153 = vmatpush2.msra.mxu0 0.0
  %154 = vmatprep.subr.mxu0 0.0
  %155 = vmatpush2.msra.mxu0 0.0
  %156 = vmatprep.subr.mxu0 0.0
  %157 = vmatpush2.msra.mxu0 0.0
  %158 = vmatprep.subr.mxu0 0.0
  %159 = vmatpush2.msra.mxu0 0.0
  %160 = vmatprep.subr.mxu0 0.0
  %161 = vmatpush2.msra.mxu0 0.0
  %162 = vmatprep.subr.mxu0 0.0
  %163 = vmatpush2.msra.mxu0 0.0
  %164 = vmatprep.subr.mxu0 0.0
  %165 = vmatpush2.msra.mxu0 0.0
  %166 = vmatprep.subr.mxu0 0.0
  %167 = vmatpush2.msra.mxu0 0.0
  %168 = vmatprep.subr.mxu0 0.0
  %169 = vmatpush2.msra.mxu0 0.0
  %170 = vmatprep.mubr.f32.mxu0 0.0
  %171 = vmatmul.mubr.f32.gmra.mxu0 %v79
  %v172 = vpop.f32.mrf.mxu0
  %v173 = vadd.f32 %v40, %v172
  %v174 = vpop.f32.mrf.mxu0
  %175 = vmatprep.mubr.f32.mxu0 0.0
  %176 = vmatmul.mubr.f32.gmra.mxu0 %v82
  %v177 = vpop.f32.mrf.mxu0
  %v178 = vadd.f32 %v45, %v177
  %v179 = vpop.f32.mrf.mxu0
  %180 = vmatprep.mubr.f32.mxu0 0.0
  %181 = vmatmul.mubr.f32.gmra.mxu0 %v85
  %v182 = vpop.f32.mrf.mxu0
  %v183 = vadd.f32 %v50, %v182
  %v184 = vpop.f32.mrf.mxu0
  %185 = vmatprep.mubr.f32.mxu0 0.0
  %186 = vmatmul.mubr.f32.gmra.mxu0 %v88
  %v187 = vpop.f32.mrf.mxu0
  %v188 = vadd.f32 %v55, %v187
  %v189 = vpop.f32.mrf.mxu0
  %190 = vmatprep.mubr.f32.mxu0 0.0
  %191 = vmatmul.mubr.f32.gmra.mxu0 %v91
  %v192 = vpop.f32.mrf.mxu0
  %v193 = vadd.f32 %v60, %v192
  %v194 = vpop.f32.mrf.mxu0
  %195 = vmatprep.mubr.f32.mxu0 0.0
  %196 = vmatmul.mubr.f32.gmra.mxu0 %v94
  %v197 = vpop.f32.mrf.mxu0
  %v198 = vadd.f32 %v65, %v197
  %v199 = vpop.f32.mrf.mxu0
  %200 = vmatprep.mubr.f32.mxu0 0.0
  %201 = vmatmul.mubr.f32.gmra.mxu0 %v97
  %v202 = vpop.f32.mrf.mxu0
  %v203 = vadd.f32 %v70, %v202
  %v204 = vpop.f32.mrf.mxu0
  %205 = vmatprep.mubr.f32.mxu0 0.0
  %206 = vmatmul.mubr.f32.gmra.mxu0 %v100
  %v207 = vpop.f32.mrf.mxu0
  %v208 = vadd.f32 %v75, %v207
  %v209 = vpop.f32.mrf.mxu0
  %210 = vdwg.mxu0
  %v211 = vmin.f32 %v173, 20.0
  %v212 = vmin.f32 %v178, 20.0
  %v213 = vmin.f32 %v183, 20.0
  %v214 = vmin.f32 %v188, 20.0
  %v215 = vmin.f32 %v193, 20.0
  %v216 = vmin.f32 %v198, 20.0
  %v217 = vmin.f32 %v203, 20.0
  %v218 = vmin.f32 %v208, 20.0
  %v219 = vmul.f32 %v211, 1.442695
  %v220 = vpow.pop %v219
  %v221 = vmul.f32 %v212, 1.442695
  %v222 = vpow.pop %v221
  %v223 = vmul.f32 %v213, 1.442695
  %v224 = vpow.pop %v223
  %v225 = vmul.f32 %v214, 1.442695
  %v226 = vpow.pop %v225
  %v227 = vmul.f32 %v215, 1.442695
  %v228 = vpow.pop %v227
  %v229 = vmul.f32 %v216, 1.442695
  %v230 = vpow.pop %v229
  %v231 = vmul.f32 %v217, 1.442695
  %v232 = vpow.pop %v231
  %v233 = vmul.f32 %v218, 1.442695
  %v234 = vpow.pop %v233
  %v235 = vadd.f32 %v220, 2.0
  %v236 = vadd.f32 %v222, 2.0
  %v237 = vadd.f32 %v224, 2.0
  %v238 = vadd.f32 %v226, 2.0
  %v239 = vadd.f32 %v228, 2.0
  %v240 = vadd.f32 %v230, 2.0
  %v241 = vadd.f32 %v232, 2.0
  %v242 = vadd.f32 %v234, 2.0
  %v243 = vmul.f32 %v220, %v235
  %v244 = vmul.f32 %v222, %v236
  %v245 = vmul.f32 %v224, %v237
  %v246 = vmul.f32 %v226, %v238
  %v247 = vmul.f32 %v228, %v239
  %v248 = vmul.f32 %v230, %v240
  %v249 = vmul.f32 %v232, %v241
  %v250 = vmul.f32 %v234, %v242
  %v251 = vadd.f32 %v243, 2.0
  %v252 = vadd.f32 %v244, 2.0
  %v253 = vadd.f32 %v245, 2.0
  %v254 = vadd.f32 %v246, 2.0
  %v255 = vadd.f32 %v247, 2.0
  %v256 = vadd.f32 %v248, 2.0
  %v257 = vadd.f32 %v249, 2.0
  %v258 = vadd.f32 %v250, 2.0
  %v259 = vrcp.pop %v251
  %v260 = vrcp.pop %v252
  %v261 = vrcp.pop %v253
  %v262 = vrcp.pop %v254
  %v263 = vrcp.pop %v255
  %v264 = vrcp.pop %v256
  %v265 = vrcp.pop %v257
  %v266 = vrcp.pop %v258
  %v267 = vmul.f32 %v251, %v259
  %v268 = vmul.f32 %v252, %v260
  %v269 = vmul.f32 %v253, %v261
  %v270 = vmul.f32 %v254, %v262
  %v271 = vmul.f32 %v255, %v263
  %v272 = vmul.f32 %v256, %v264
  %v273 = vmul.f32 %v257, %v265
  %v274 = vmul.f32 %v258, %v266
  %v275 = vsub.f32 2.0, %v267
  %v276 = vsub.f32 2.0, %v268
  %v277 = vsub.f32 2.0, %v269
  %v278 = vsub.f32 2.0, %v270
  %v279 = vsub.f32 2.0, %v271
  %v280 = vsub.f32 2.0, %v272
  %v281 = vsub.f32 2.0, %v273
  %v282 = vsub.f32 2.0, %v274
  %v283 = vmul.f32 %v259, %v275
  %v284 = vmul.f32 %v260, %v276
  %v285 = vmul.f32 %v261, %v277
  %v286 = vmul.f32 %v262, %v278
  %v287 = vmul.f32 %v263, %v279
  %v288 = vmul.f32 %v264, %v280
  %v289 = vmul.f32 %v265, %v281
  %v290 = vmul.f32 %v266, %v282
  %v291 = vmul.f32 %v173, %v243
  %v292 = vmul.f32 %v178, %v244
  %v293 = vmul.f32 %v183, %v245
  %v294 = vmul.f32 %v188, %v246
  %v295 = vmul.f32 %v193, %v247
  %v296 = vmul.f32 %v198, %v248
  %v297 = vmul.f32 %v203, %v249
  %v298 = vmul.f32 %v208, %v250
  %v299 = vmul.f32 %v291, %v283
  %v300 = vmul.f32 %v292, %v284
  %v301 = vmul.f32 %v293, %v285
  %v302 = vmul.f32 %v294, %v286
  %v303 = vmul.f32 %v295, %v287
  %v304 = vmul.f32 %v296, %v288
  %v305 = vmul.f32 %v297, %v289
  %v306 = vmul.f32 %v298, %v290
  %v307 = vld [vmem:[%s3] sm:$0xff]
  %v308 = vld [vmem:[%s4] sm:$0xff]
  %310 = vset.pattern.permute.xlu0 0
  %311 = vperm.xlu0 %310, %v308
  %v312 = vpop.permute.xlu0 %311
  %vm314 = vcmask 523264
  %v316 = vsel %vm314, %v307, 0
  %318 = vmatprep.subr.mxu0 0.0
  %319 = vmatpush1.msra.mxu0 0.0
  %320 = vmatprep.subr.mxu0 0.0
  %321 = vmatpush1.msra.mxu0 0.0
  %322 = vmatprep.subr.mxu0 0.0
  %323 = vmatpush1.msra.mxu0 0.0
  %324 = vmatprep.subr.mxu0 0.0
  %325 = vmatpush1.msra.mxu0 0.0
  %326 = vmatprep.subr.mxu0 0.0
  %327 = vmatpush1.msra.mxu0 0.0
  %328 = vmatprep.subr.mxu0 0.0
  %329 = vmatpush1.msra.mxu0 0.0
  %330 = vmatprep.subr.mxu0 0.0
  %331 = vmatpush1.msra.mxu0 0.0
  %332 = vmatprep.subr.mxu0 0.0
  %333 = vmatpush1.msra.mxu0 0.0
  %334 = vmatprep.subr.mxu0 0.0
  %335 = vmatpush1.msra.mxu0 %v306
  %336 = vmatprep.subr.mxu0 0.0
  %337 = vmatpush1.msra.mxu0 %v305
  %338 = vmatprep.subr.mxu0 0.0
  %339 = vmatpush1.msra.mxu0 %v304
  %340 = vmatprep.subr.mxu0 0.0
  %341 = vmatpush1.msra.mxu0 %v303
  %342 = vmatprep.subr.mxu0 0.0
  %343 = vmatpush1.msra.mxu0 %v302
  %344 = vmatprep.subr.mxu0 0.0
  %345 = vmatpush1.msra.mxu0 %v301
  %346 = vmatprep.subr.mxu0 0.0
  %347 = vmatpush1.msra.mxu0 %v300
  %348 = vmatprep.subr.mxu0 0.0
  %349 = vmatpush1.msra.mxu0 %v299
  %350 = vmatprep.subr.mxu0 0.0
  %351 = vmatpush2.msra.mxu0 0.0
  %352 = vmatprep.subr.mxu0 0.0
  %353 = vmatpush2.msra.mxu0 0.0
  %354 = vmatprep.subr.mxu0 0.0
  %355 = vmatpush2.msra.mxu0 0.0
  %356 = vmatprep.subr.mxu0 0.0
  %357 = vmatpush2.msra.mxu0 0.0
  %358 = vmatprep.subr.mxu0 0.0
  %359 = vmatpush2.msra.mxu0 0.0
  %360 = vmatprep.subr.mxu0 0.0
  %361 = vmatpush2.msra.mxu0 0.0
  %362 = vmatprep.subr.mxu0 0.0
  %363 = vmatpush2.msra.mxu0 0.0
  %364 = vmatprep.subr.mxu0 0.0
  %365 = vmatpush2.msra.mxu0 0.0
  %366 = vmatprep.subr.mxu0 0.0
  %367 = vmatpush2.msra.mxu0 0.0
  %368 = vmatprep.subr.mxu0 0.0
  %369 = vmatpush2.msra.mxu0 0.0
  %370 = vmatprep.subr.mxu0 0.0
  %371 = vmatpush2.msra.mxu0 0.0
  %372 = vmatprep.subr.mxu0 0.0
  %373 = vmatpush2.msra.mxu0 0.0
  %374 = vmatprep.subr.mxu0 0.0
  %375 = vmatpush2.msra.mxu0 0.0
  %376 = vmatprep.subr.mxu0 0.0
  %377 = vmatpush2.msra.mxu0 0.0
  %378 = vmatprep.subr.mxu0 0.0
  %379 = vmatpush2.msra.mxu0 0.0
  %380 = vmatprep.subr.mxu0 0.0
  %381 = vmatpush2.msra.mxu0 0.0
  %382 = vmatprep.mubr.f32.mxu0 0.0
  %383 = vmatmul.mubr.f32.gmra.mxu0 %v316
  %v384 = vpop.f32.mrf.mxu0
  %v385 = vadd.f32 %v312, %v384
  %v386 = vpop.f32.mrf.mxu0
  %387 = vdwg.mxu0
  %388 = vst [vmem:[%s5] sm:$0xf] %v20
  %389 = vst [vmem:[%s5 + $0x4] sm:$0xff] %v385
  // Predicated region
  $region22: #{tpu_custom_call.1} parent=0 // pred_check
    _
  $region23: #{tpu_custom_call.1} parent=0 // pred_check_branch
    %391 = sbr.rel (0) target = $region25
  $region24: #{tpu_custom_call.1} parent=0 // pred_region
    _
  $region25: #{tpu_custom_call.1} parent=0 // pred_fallthru
    _
  // Predicated region
  $region26: #{tpu_custom_call.1} parent=0 // pred_check
    _
  $region27: #{tpu_custom_call.1} parent=0 // pred_check_branch
    %393 = sbr.rel (0) target = $region29
  $region28: #{tpu_custom_call.1} parent=0 // pred_region
    _
  $region29: #{tpu_custom_call.1} parent=0 // pred_fallthru
    _

</llo_original>
